<compile_context>
chip_gen: v5e
topology: v5e:2x2
jax: 0.10.0
libtpu: 0.0.40
codegen_flags: <defaults>
</compile_context>

<pallas_src>
import functools

import numpy as np
import jax
import jax.numpy as jnp
from jax.experimental import pallas as pl
from jax.experimental.pallas import tpu as pltpu


def _round_up(x, m):
    return ((x + m - 1) // m) * m


# --------------------------------- kernel -----------------------------------

def _umps_kernel(x_ref, gate_ref, out_ref, *, N):
    """One batch tile.

    x_ref    : (2N, TB)   rows 0..N-1 are component-0, rows N..2N-1 component-1
    gate_ref : (D/2, D)   folded circuit, label-qubit==0 rows only (bf16)
    out_ref  : (1, TB)    lane-dense per-sample result (f32)
    """
    x = x_ref[...]                        # (2N, TB)
    x0 = x[:N, :]                         # (N, TB) component 0 per site
    x1 = x[N:, :]                         # (N, TB) component 1 per site

    # per-site L2 normalization (rsqrt -> EUP); clamp guards exact-zero vectors
    inv = jax.lax.rsqrt(jnp.maximum(x0 * x0 + x1 * x1, 1e-30))
    x0 = x0 * inv
    x1 = x1 * inv

    # ---- product state via Kronecker doubling ------------------------------
    # Seed: the 3 least-significant qubits (sites N-1, N-2, N-3) -> (8, TB),
    # built as three broadcast factors fused into one multiply statement.
    r = jax.lax.broadcasted_iota(jnp.int32, (8, 1), 0)            # rows 0..7
    f0 = jnp.where((r & 1) > 0,        x1[N - 1:N, :],     x0[N - 1:N, :])
    f1 = jnp.where(((r >> 1) & 1) > 0, x1[N - 2:N - 1, :], x0[N - 2:N - 1, :])
    f2 = jnp.where(((r >> 2) & 1) > 0, x1[N - 3:N - 2, :], x0[N - 3:N - 2, :])
    psi = f0 * f1 * f2                                            # (8, TB)

    # Doubling: prepend one site per step (that site becomes the new MSB).
    # Every concatenation is along sublanes with 8-aligned operand sizes.
    for i in range(N - 4, -1, -1):
        psi = jnp.concatenate(
            [psi * x0[i:i + 1, :], psi * x1[i:i + 1, :]], axis=0)
    # psi: (2**N, TB); basis ordering: site 0 = most-significant bit (matches
    # the host-side gate fold and the reference contraction order).

    # ---- whole (masked) staircase circuit: one bf16 MXU matmul -------------
    psi_out = jnp.dot(gate_ref[...], psi.astype(gate_ref.dtype),
                      preferred_element_type=jnp.float32)         # (D/2, TB)

    # label selection already folded into the gate rows -> plain squared sum
    out_ref[...] = jnp.sum(psi_out * psi_out, axis=0, keepdims=True)  # (1, TB)


# --------------------------------- wrapper ----------------------------------

def umps_forward(X, gate_half, *, block_b=512):
    """X: (N, B, 2) float.  gate_half: (2**N / 2, 2**N) folded circuit keeping
    only the label-qubit==0 rows (bf16 recommended).  Returns (B,) float32."""
    N, B, d = X.shape
    assert d == 2, "local dimension must be 2 (d == chi == l == 2)"
    assert N >= 3, "kernel assumes at least 3 sites"
    D = 2 ** N
    assert gate_half.shape == (D // 2, D)

    # merge both site components into one (2N, B) slab -> single input DMA
    xs = jnp.concatenate([X[:, :, 0], X[:, :, 1]], axis=0).astype(jnp.float32)

    # Batch tile: as large as block_b, but capped so the ("parallel",) grid
    # keeps >= 2 steps whenever B allows it (v7x shards grid steps across its
    # 2 TensorCores).  Lane width stays a multiple of 128.
    bb = max(128, min(block_b, _round_up(pl.cdiv(B, 2), 128)))
    B_pad = _round_up(B, bb)
    if B_pad != B:
        pad = jnp.ones((2 * N, B_pad - B), jnp.float32)   # harmless pad columns
        xs = jnp.concatenate([xs, pad], axis=1)
    num_blocks = B_pad // bb

    # Scoped-VMEM budget from the actual buffers (with generous headroom),
    # not a round number: v5e's default scoped VMEM is only 16 MiB.
    gate_bytes = gate_half.size * jnp.dtype(gate_half.dtype).itemsize
    psi_bytes = D * bb * 4
    est = (2 * (2 * N * bb * 4)          # double-buffered xs tile
           + 2 * gate_bytes              # gate (constant index map, 2 buffers)
           + 2 * (bb * 4)                # double-buffered out tile
           + 10 * psi_bytes              # product chain / matmul / epilogue temps
           + (8 << 20))                  # compiler headroom
    vmem_limit = int(min(64 << 20, max(est, 32 << 20)))

    kernel = functools.partial(_umps_kernel, N=N)
    out = pl.pallas_call(
        kernel,
        out_shape=jax.ShapeDtypeStruct((1, B_pad), jnp.float32),
        grid_spec=pltpu.PrefetchScalarGridSpec(
            num_scalar_prefetch=0,
            grid=(num_blocks,),
            in_specs=[
                pl.BlockSpec((2 * N, bb), lambda i: (0, i)),     # xs tile
                pl.BlockSpec((D // 2, D), lambda i: (0, 0)),     # half-gate (DMA'd once)
            ],
            out_specs=pl.BlockSpec((1, bb), lambda i: (0, i)),   # lane-dense out
        ),
        compiler_params=pltpu.CompilerParams(
            dimension_semantics=("parallel",),
            vmem_limit_bytes=vmem_limit,
        ),
    )(xs, gate_half)
    return out[0, :B]


# ------------------------- parameter setup (glue) ---------------------------

def make_params(key, n_gates, chi=2):
    """Deterministic orthogonal (chi^2 x chi^2) matrices, like ortho_group.rvs."""
    keys = jax.random.split(key, n_gates)
    mats = []
    for k in range(n_gates):
        a = jax.random.normal(keys[k], (chi * chi, chi * chi), dtype=jnp.float32)
        q, r = jnp.linalg.qr(a)
        q = q * jnp.sign(jnp.diagonal(r))[None, :]
        mats.append(q)
    return jnp.stack(mats)                 # (n_gates, 4, 4)


def fold_circuit(params4, N, *, dtype=jnp.bfloat16):
    """Fold the whole staircase circuit into one (2**N, 2**N) matrix (f64 on
    host), drop rows whose label qubit (qubit N-1 = LSB of the basis index) is
    1, and cast.  Returns a (2**N / 2, 2**N) device array."""
    params4 = np.asarray(params4, dtype=np.float64)
    D = 2 ** N
    G = np.eye(D, dtype=np.float64)
    for k in range(params4.shape[0]):
        i = k % (N - 1)                    # gate k acts on qubits (i, i+1)
        L = 2 ** i
        R = 2 ** (N - 2 - i)
        M = np.kron(np.eye(L), np.kron(params4[k], np.eye(R)))
        G = M @ G                          # apply gate 0 first, gate n-1 last
    keep = (np.arange(D) & 1) == 0         # label-qubit bit == 0
    return jnp.asarray(G[keep], dtype=dtype)


# ----------------------- float64 numpy reference (check) --------------------

def umps_reference(X, params4, N):
    X = np.asarray(X, dtype=np.float64)
    params4 = np.asarray(params4, dtype=np.float64)
    B = X.shape[1]
    Xn = X / np.linalg.norm(X, axis=-1, keepdims=True)
    psi = Xn[0]                                            # (B, 2)
    for i in range(1, N):
        psi = (psi[:, :, None] * Xn[i][:, None, :]).reshape(B, -1)
    for k in range(params4.shape[0]):
        i = k % (N - 1)
        L = 2 ** i
        R = 2 ** (N - 2 - i)
        p = psi.reshape(B, L, 4, R)
        p = np.einsum('oi,blir->blor', params4[k], p)
        psi = p.reshape(B, -1)
    psi = psi.reshape(B, -1, 2)
    return np.sum(psi[:, :, 0] ** 2, axis=-1)


if __name__ == "__main__":
    N, layers, chi = 8, 2, 2          # d == l == chi == 2
    B = 600                           # -> two 384-wide tiles + padding exercised
    n_gates = layers * (N - 1)

    key = jax.random.PRNGKey(0)
    k_par, k_x = jax.random.split(key)

    params4 = make_params(k_par, n_gates, chi)     # (14, 4, 4) orthogonal
    gate_half = fold_circuit(params4, N)           # (128, 256) bf16 folded circuit

    X = jax.random.normal(k_x, (N, B, 2), dtype=jnp.float32)

    out = umps_forward(X, gate_half, block_b=512)
    out = jax.block_until_ready(out)
    assert out.shape == (B,)

    ref = umps_reference(X, params4, N)            # float64 gold reference
    # bf16 gate + bf16 psi at the MXU -> ~2-7e-4 absolute error on outputs in
    # [0, 1]; tolerance loosened accordingly (review-sanctioned).
    np.testing.assert_allclose(np.asarray(out), ref, rtol=5e-3, atol=1e-3)

    print("KERNEL_OK")
</pallas_src>

<mosaic_0001>
module attributes {stable_mosaic.version = 11 : i64} {
  func.func @_umps_kernel(%arg0: i32, %arg1: memref<16x384xf32, #tpu.memory_space<vmem>>, %arg2: memref<128x256xbf16, #tpu.memory_space<vmem>>, %arg3: memref<1x384xf32, #tpu.memory_space<vmem>>) attributes {dimension_semantics = [#tpu.dimension_semantics<parallel>], iteration_bounds = array<i64: 2>, scalar_prefetch = 0 : i64, scratch_operands = 0 : i64, tpu.core_type = #tpu.core_type<tc>, window_params = [{transform_indices = @transform_0, window_bounds = array<i64: 16, 384>}, {pipeline_mode = #tpu.pipeline_mode<synchronous>, transform_indices = @transform_1, window_bounds = array<i64: 128, 256>}, {transform_indices = @transform_2, window_bounds = array<i64: 1, 384>}]} {
    %c0 = arith.constant 0 : index
    %c0_0 = arith.constant 0 : index
    %0 = vector.load %arg1[%c0, %c0_0] : memref<16x384xf32, #tpu.memory_space<vmem>>, vector<16x384xf32>
    %1 = vector.extract_strided_slice %0 {offsets = [0, 0], sizes = [8, 384], strides = [1, 1]} : vector<16x384xf32> to vector<8x384xf32>
    %2 = vector.extract_strided_slice %0 {offsets = [8, 0], sizes = [8, 384], strides = [1, 1]} : vector<16x384xf32> to vector<8x384xf32>
    %3 = arith.mulf %1, %1 : vector<8x384xf32>
    %4 = arith.mulf %2, %2 : vector<8x384xf32>
    %5 = arith.addf %3, %4 : vector<8x384xf32>
    %cst = arith.constant 1.000000e-30 : f32
    %6 = vector.broadcast %cst : f32 to vector<8x384xf32>
    %7 = arith.maximumf %5, %6 : vector<8x384xf32>
    %8 = math.rsqrt %7 : vector<8x384xf32>
    %9 = arith.mulf %1, %8 : vector<8x384xf32>
    %10 = arith.mulf %2, %8 : vector<8x384xf32>
    %11 = tpu.iota {dimensions = array<i32: 0>} : vector<8x1xi32>
    %c1_i32 = arith.constant 1 : i32
    %12 = vector.broadcast %c1_i32 : i32 to vector<8x1xi32>
    %13 = arith.andi %11, %12 : vector<8x1xi32>
    %c0_i32 = arith.constant 0 : i32
    %14 = vector.broadcast %c0_i32 : i32 to vector<8x1xi32>
    %15 = arith.cmpi sgt, %13, %14 : vector<8x1xi32>
    %16 = vector.extract_strided_slice %10 {offsets = [7, 0], sizes = [1, 384], strides = [1, 1]} : vector<8x384xf32> to vector<1x384xf32>
    %17 = vector.extract_strided_slice %9 {offsets = [7, 0], sizes = [1, 384], strides = [1, 1]} : vector<8x384xf32> to vector<1x384xf32>
    %18 = vector.shape_cast %15 : vector<8x1xi1> to vector<8x1xi1>
    %19 = vector.broadcast %18 : vector<8x1xi1> to vector<8x384xi1>
    %20 = vector.shape_cast %16 : vector<1x384xf32> to vector<1x384xf32>
    %21 = vector.broadcast %20 : vector<1x384xf32> to vector<8x384xf32>
    %22 = vector.shape_cast %17 : vector<1x384xf32> to vector<1x384xf32>
    %23 = vector.broadcast %22 : vector<1x384xf32> to vector<8x384xf32>
    %24 = arith.select %19, %21, %23 : vector<8x384xi1>, vector<8x384xf32>
    %c1_i32_1 = arith.constant 1 : i32
    %25 = vector.broadcast %c1_i32_1 : i32 to vector<8x1xi32>
    %26 = arith.shrsi %11, %25 : vector<8x1xi32>
    %c1_i32_2 = arith.constant 1 : i32
    %27 = vector.broadcast %c1_i32_2 : i32 to vector<8x1xi32>
    %28 = arith.andi %26, %27 : vector<8x1xi32>
    %c0_i32_3 = arith.constant 0 : i32
    %29 = vector.broadcast %c0_i32_3 : i32 to vector<8x1xi32>
    %30 = arith.cmpi sgt, %28, %29 : vector<8x1xi32>
    %31 = vector.extract_strided_slice %10 {offsets = [6, 0], sizes = [1, 384], strides = [1, 1]} : vector<8x384xf32> to vector<1x384xf32>
    %32 = vector.extract_strided_slice %9 {offsets = [6, 0], sizes = [1, 384], strides = [1, 1]} : vector<8x384xf32> to vector<1x384xf32>
    %33 = vector.shape_cast %30 : vector<8x1xi1> to vector<8x1xi1>
    %34 = vector.broadcast %33 : vector<8x1xi1> to vector<8x384xi1>
    %35 = vector.shape_cast %31 : vector<1x384xf32> to vector<1x384xf32>
    %36 = vector.broadcast %35 : vector<1x384xf32> to vector<8x384xf32>
    %37 = vector.shape_cast %32 : vector<1x384xf32> to vector<1x384xf32>
    %38 = vector.broadcast %37 : vector<1x384xf32> to vector<8x384xf32>
    %39 = arith.select %34, %36, %38 : vector<8x384xi1>, vector<8x384xf32>
    %c2_i32 = arith.constant 2 : i32
    %40 = vector.broadcast %c2_i32 : i32 to vector<8x1xi32>
    %41 = arith.shrsi %11, %40 : vector<8x1xi32>
    %c1_i32_4 = arith.constant 1 : i32
    %42 = vector.broadcast %c1_i32_4 : i32 to vector<8x1xi32>
    %43 = arith.andi %41, %42 : vector<8x1xi32>
    %c0_i32_5 = arith.constant 0 : i32
    %44 = vector.broadcast %c0_i32_5 : i32 to vector<8x1xi32>
    %45 = arith.cmpi sgt, %43, %44 : vector<8x1xi32>
    %46 = vector.extract_strided_slice %10 {offsets = [5, 0], sizes = [1, 384], strides = [1, 1]} : vector<8x384xf32> to vector<1x384xf32>
    %47 = vector.extract_strided_slice %9 {offsets = [5, 0], sizes = [1, 384], strides = [1, 1]} : vector<8x384xf32> to vector<1x384xf32>
    %48 = vector.shape_cast %45 : vector<8x1xi1> to vector<8x1xi1>
    %49 = vector.broadcast %48 : vector<8x1xi1> to vector<8x384xi1>
    %50 = vector.shape_cast %46 : vector<1x384xf32> to vector<1x384xf32>
    %51 = vector.broadcast %50 : vector<1x384xf32> to vector<8x384xf32>
    %52 = vector.shape_cast %47 : vector<1x384xf32> to vector<1x384xf32>
    %53 = vector.broadcast %52 : vector<1x384xf32> to vector<8x384xf32>
    %54 = arith.select %49, %51, %53 : vector<8x384xi1>, vector<8x384xf32>
    %55 = arith.mulf %24, %39 : vector<8x384xf32>
    %56 = arith.mulf %55, %54 : vector<8x384xf32>
    %57 = vector.extract_strided_slice %9 {offsets = [4, 0], sizes = [1, 384], strides = [1, 1]} : vector<8x384xf32> to vector<1x384xf32>
    %58 = vector.broadcast %57 : vector<1x384xf32> to vector<8x384xf32>
    %59 = arith.mulf %56, %58 : vector<8x384xf32>
    %60 = vector.extract_strided_slice %10 {offsets = [4, 0], sizes = [1, 384], strides = [1, 1]} : vector<8x384xf32> to vector<1x384xf32>
    %61 = vector.broadcast %60 : vector<1x384xf32> to vector<8x384xf32>
    %62 = arith.mulf %56, %61 : vector<8x384xf32>
    %63 = tpu.concatenate %59, %62 in 0 : vector<8x384xf32>, vector<8x384xf32> -> vector<16x384xf32>
    %64 = vector.extract_strided_slice %9 {offsets = [3, 0], sizes = [1, 384], strides = [1, 1]} : vector<8x384xf32> to vector<1x384xf32>
    %65 = vector.broadcast %64 : vector<1x384xf32> to vector<16x384xf32>
    %66 = arith.mulf %63, %65 : vector<16x384xf32>
    %67 = vector.extract_strided_slice %10 {offsets = [3, 0], sizes = [1, 384], strides = [1, 1]} : vector<8x384xf32> to vector<1x384xf32>
    %68 = vector.broadcast %67 : vector<1x384xf32> to vector<16x384xf32>
    %69 = arith.mulf %63, %68 : vector<16x384xf32>
    %70 = tpu.concatenate %66, %69 in 0 : vector<16x384xf32>, vector<16x384xf32> -> vector<32x384xf32>
    %71 = vector.extract_strided_slice %9 {offsets = [2, 0], sizes = [1, 384], strides = [1, 1]} : vector<8x384xf32> to vector<1x384xf32>
    %72 = vector.broadcast %71 : vector<1x384xf32> to vector<32x384xf32>
    %73 = arith.mulf %70, %72 : vector<32x384xf32>
    %74 = vector.extract_strided_slice %10 {offsets = [2, 0], sizes = [1, 384], strides = [1, 1]} : vector<8x384xf32> to vector<1x384xf32>
    %75 = vector.broadcast %74 : vector<1x384xf32> to vector<32x384xf32>
    %76 = arith.mulf %70, %75 : vector<32x384xf32>
    %77 = tpu.concatenate %73, %76 in 0 : vector<32x384xf32>, vector<32x384xf32> -> vector<64x384xf32>
    %78 = vector.extract_strided_slice %9 {offsets = [1, 0], sizes = [1, 384], strides = [1, 1]} : vector<8x384xf32> to vector<1x384xf32>
    %79 = vector.broadcast %78 : vector<1x384xf32> to vector<64x384xf32>
    %80 = arith.mulf %77, %79 : vector<64x384xf32>
    %81 = vector.extract_strided_slice %10 {offsets = [1, 0], sizes = [1, 384], strides = [1, 1]} : vector<8x384xf32> to vector<1x384xf32>
    %82 = vector.broadcast %81 : vector<1x384xf32> to vector<64x384xf32>
    %83 = arith.mulf %77, %82 : vector<64x384xf32>
    %84 = tpu.concatenate %80, %83 in 0 : vector<64x384xf32>, vector<64x384xf32> -> vector<128x384xf32>
    %85 = vector.extract_strided_slice %9 {offsets = [0, 0], sizes = [1, 384], strides = [1, 1]} : vector<8x384xf32> to vector<1x384xf32>
    %86 = vector.broadcast %85 : vector<1x384xf32> to vector<128x384xf32>
    %87 = arith.mulf %84, %86 : vector<128x384xf32>
    %88 = vector.extract_strided_slice %10 {offsets = [0, 0], sizes = [1, 384], strides = [1, 1]} : vector<8x384xf32> to vector<1x384xf32>
    %89 = vector.broadcast %88 : vector<1x384xf32> to vector<128x384xf32>
    %90 = arith.mulf %84, %89 : vector<128x384xf32>
    %91 = tpu.concatenate %87, %90 in 0 : vector<128x384xf32>, vector<128x384xf32> -> vector<256x384xf32>
    %c0_6 = arith.constant 0 : index
    %c0_7 = arith.constant 0 : index
    %92 = vector.load %arg2[%c0_6, %c0_7] : memref<128x256xbf16, #tpu.memory_space<vmem>>, vector<128x256xbf16>
    %93 = arith.truncf %91 : vector<256x384xf32> to vector<256x384xbf16>
    %cst_8 = arith.constant dense<0.000000e+00> : vector<128x384xf32>
    %94 = tpu.matmul %92, %93, %cst_8 {dimension_numbers = #tpu.dot_dimension_numbers<[1], [0], [0], [1], [0, 0, 1, 1], [], []>} : vector<128x256xbf16>, vector<256x384xbf16>, vector<128x384xf32> -> vector<128x384xf32>
    %95 = arith.mulf %94, %94 : vector<128x384xf32>
    %cst_9 = arith.constant dense<0.000000e+00> : vector<384xf32>
    %96 = vector.multi_reduction <add>, %95, %cst_9 [0] : vector<128x384xf32> to vector<384xf32>
    %97 = vector.shape_cast %96 : vector<384xf32> to vector<1x384xf32>
    %c0_10 = arith.constant 0 : index
    %c0_11 = arith.constant 0 : index
    %98 = vector.load %arg3[%c0_10, %c0_11] : memref<1x384xf32, #tpu.memory_space<vmem>>, vector<1x384xf32>
    tpu.vector_store %arg3[%c0_10, %c0_11], %97 {strides = array<i32>} : memref<1x384xf32, #tpu.memory_space<vmem>>, vector<1x384xf32>,
    return
  }
  func.func @transform_0(%arg0: i32) -> (i32, i32) {
    %c0_i32 = arith.constant 0 : i32
    %c0_i32_0 = arith.constant 0 : i32
    return %c0_i32, %arg0 : i32, i32
  }
  func.func @transform_1(%arg0: i32) -> (i32, i32) {
    %c0_i32 = arith.constant 0 : i32
    %c0_i32_0 = arith.constant 0 : i32
    %c0_i32_1 = arith.constant 0 : i32
    return %c0_i32, %c0_i32_0 : i32, i32
  }
  func.func @transform_2(%arg0: i32) -> (i32, i32) {
    %c0_i32 = arith.constant 0 : i32
    %c0_i32_0 = arith.constant 0 : i32
    return %c0_i32, %arg0 : i32, i32
  }
}

</mosaic_0001>

<llo_original>
// kernel: tpu_custom_call.1
$region0: #{tpu_custom_call.1}
  #allocation0 [shape = 'u32[]', space=smem, size = 0x4, offset = 0x4, fixed_abs, tag = 'smem constant byte address 0x4 - core index']
  #allocation1 [shape = 'u32[72,128]{1,0:T(1,128)}', space=vmem, size = 0x9000, scoped, tag = 'internal scratch']
  %s0 = inlined_call_operand.hbm [shape: f32[16,768], index: 0, kind: input, shape index: {}]
  %s1 = inlined_call_operand.hbm [shape: bf16[128,256], index: 1, kind: input, shape index: {}]
  %s2 = inlined_call_operand.hbm [shape: f32[1,768], index: 2, kind: output, shape index: {}]
  %s3 = sld [smem:[#allocation0]]
  $region49: #{tpu_custom_call.1} parent=0
    _
  %s5 = ssub.s32 1, %s3
  %s6 = scalar_select 0, %s5, %s3
  $region1: #{tpu_custom_call.1} parent=0
    #allocation2 [shape = 'u8[49152]{0}', space=vmem, size = 0xc000, scoped, tag = 'input window, operand 0']
    #allocation3 [shape = 's32[2]{0}', space=sflag, size = 0x8, scoped, tag = 'scoped memory for tpu_custom_call.1']
    #allocation4 [shape = 's32[2]{0}', space=sflag, size = 0x8, scoped, tag = 'scoped memory for tpu_custom_call.1']
    #allocation5 [shape = 'u8[65536]{0}', space=vmem, size = 0x10000, scoped, tag = 'input window, operand 1, single buffered']
    #allocation6 [shape = 's32[1]{0}', space=sflag, size = 0x4, scoped, tag = 'scoped memory for tpu_custom_call.1']
    #allocation7 [shape = 'u8[3072]{0}', space=vmem, size = 0xc00, scoped, tag = 'output window, operand 0']
    %7 = vsyncpa [#allocation3], 0
    %s8 = scalar_lea.sflag [#allocation3], 1
    %9 = vsyncpa %s8, 0
    %10 = vsyncpa [#allocation6], 0
    %11 = vsyncpa [#allocation4], 0
    %s12 = scalar_lea.sflag [#allocation4], 1
    %13 = vsyncpa %s12, 0
    loop: start=0, step=1, limit=4
    $region2: #{tpu_custom_call.1} parent=1 // loop_pre_header
      _
    $region3: #{tpu_custom_call.1} parent=1 // loop_header
      %s15 = sphi 0, %s19
      %p16 = scmp.ge.s32.totalorder %s15, 4
      %s25 = sphi 0, %s27
      %s28 = sphi 0, %s25
      %s29 = sphi 0, %s28
      %s45 = sphi 0, %s29
      %s49 = sphi 0, %s49
      %s51 = sphi 0, %s49
      %s52 = sphi 0, %s51
      %s66 = sphi 0, %s52
      %s72 = sphi 0, %s74
      %s75 = sphi 0, %s72
      %s76 = sphi 0, %s75
      %s92 = sphi 0, %s76
    $region4: #{tpu_custom_call.1} parent=1 // loop_header_branch
      %18 = sbr.rel (%p16) target = $region8
    $region5: #{tpu_custom_call.1} parent=1 // loop_body
      %s20 = ssub.s32 %s15, 1
      %s21 = ssub.s32 %s15, 2
      %s22 = sadd.s32 %s15, 1
      %s23 = ssub.s32 %s15, %s22
      %p24 = scmp.eq.s32.totalorder %s23, 0
      %s26 = sadd.s32 %s25, 1
      %s27 = scalar_select %p24, %s25, %s26
      %p30 = pneg %p24
      %p31 = scmp.eq.s32.totalorder %s15, 1
      %p32 = por %p30, %p31
      %p33 = scmp.ne.s32.totalorder %s25, %s28
      %p34 = scmp.eq.s32.totalorder %s15, 0
      %p35 = por %p33, %p34
      %p36 = scmp.ne.s32.totalorder %s25, %s28
      %p37 = scmp.eq.s32.totalorder %s20, 1
      %p38 = por %p36, %p37
      %p39 = scmp.ne.s32.totalorder %s28, %s29
      %p40 = scmp.eq.s32.totalorder %s20, 0
      %p41 = por %p39, %p40
      %p42 = scmp.ne.s32.totalorder %s28, %s29
      %p43 = scmp.eq.s32.totalorder %s21, 1
      %p44 = por %p42, %p43
      %p46 = scmp.ne.s32.totalorder %s29, %s45
      %p47 = scmp.eq.s32.totalorder %s21, 0
      %p48 = por %p46, %p47
      %s50 = sadd.s32 %s49, 1
      %p53 = scmp.eq.s32.totalorder %s15, 1
      %p54 = scmp.ne.s32.totalorder %s49, %s51
      %p55 = scmp.eq.s32.totalorder %s15, 0
      %p56 = por %p54, %p55
      %p57 = scmp.ne.s32.totalorder %s49, %s51
      %p58 = scmp.eq.s32.totalorder %s20, 1
      %p59 = por %p57, %p58
      %p60 = scmp.ne.s32.totalorder %s51, %s52
      %p61 = scmp.eq.s32.totalorder %s20, 0
      %p62 = por %p60, %p61
      %p63 = scmp.ne.s32.totalorder %s51, %s52
      %p64 = scmp.eq.s32.totalorder %s21, 1
      %p65 = por %p63, %p64
      %p67 = scmp.ne.s32.totalorder %s52, %s66
      %p68 = scmp.eq.s32.totalorder %s21, 0
      %p69 = por %p67, %p68
      %s70 = ssub.s32 %s15, %s22
      %p71 = scmp.eq.s32.totalorder %s70, 0
      %s73 = sadd.s32 %s72, 1
      %s74 = scalar_select %p71, %s72, %s73
      %p77 = pneg %p71
      %p78 = scmp.eq.s32.totalorder %s15, 1
      %p79 = por %p77, %p78
      %p80 = scmp.ne.s32.totalorder %s72, %s75
      %p81 = scmp.eq.s32.totalorder %s15, 0
      %p82 = por %p80, %p81
      %p83 = scmp.ne.s32.totalorder %s72, %s75
      %p84 = scmp.eq.s32.totalorder %s20, 1
      %p85 = por %p83, %p84
      %p86 = scmp.ne.s32.totalorder %s75, %s76
      %p87 = scmp.eq.s32.totalorder %s20, 0
      %p88 = por %p86, %p87
      %p89 = scmp.ne.s32.totalorder %s75, %s76
      %p90 = scmp.eq.s32.totalorder %s21, 1
      %p91 = por %p89, %p90
      %p93 = scmp.ne.s32.totalorder %s76, %s92
      %p94 = scmp.eq.s32.totalorder %s21, 0
      %p95 = por %p93, %p94
      %p96 = scmp.le.s32.totalorder 1, %s15
      %p97 = scmp.lt.s32.totalorder %s15, 3
      %p98 = pnand %p96, %p97
      %p99 = pneg %p98
      // Predicated region
      $region9: #{tpu_custom_call.1} parent=5 // pred_check
        _
      $region10: #{tpu_custom_call.1} parent=5 // pred_check_branch
        %101 = sbr.rel (%p98) target = $region12
      $region11: #{tpu_custom_call.1} parent=5 // pred_region
        %s102 = ssub.s32 %s15, 1
        // Predicated region
        $region13: #{tpu_custom_call.1} parent=11 // pred_check
          %p103 = pneg %p62
        $region14: #{tpu_custom_call.1} parent=11 // pred_check_branch
          %105 = sbr.rel (%p103) target = $region16
        $region15: #{tpu_custom_call.1} parent=11 // pred_region
          %107 = vsyncadd [#allocation6], 0
          %s108 = sshll.u32 %s1, 4
          %s109 = int_to_ptr.hbm [resolvable:$true] %s108
          %s110 = sshll.u32 [#allocation5], 4
          %s111 = int_to_ptr.vmem [resolvable:$true] %s110
          %116 = dma.hbm_to_vmem [thread:$0]  %s109, 2048, %s111, [#allocation6], 128, 128, 8
        $region16: #{tpu_custom_call.1} parent=11 // pred_fallthru
          _
      $region12: #{tpu_custom_call.1} parent=5 // pred_fallthru
        _
      %p117 = scmp.lt.s32.totalorder %s15, 2
      // Predicated region
      $region17: #{tpu_custom_call.1} parent=5 // pred_check
        %p118 = pneg %p117
      $region18: #{tpu_custom_call.1} parent=5 // pred_check_branch
        %120 = sbr.rel (%p118) target = $region20
      $region19: #{tpu_custom_call.1} parent=5 // pred_region
        // Predicated region
        $region21: #{tpu_custom_call.1} parent=19 // pred_check
          %p121 = pneg %p35
        $region22: #{tpu_custom_call.1} parent=19 // pred_check_branch
          %123 = sbr.rel (%p121) target = $region24
        $region23: #{tpu_custom_call.1} parent=19 // pred_region
          %s124 = sand.u32 %s25, 1
          %s125 = scalar_lea.sflag [#allocation3], %s124
          %s126 = sand.u32 %s25, 1
          %s127 = smul.addr %s126, 48
          %s128 = scalar_lea.vmem [#allocation2], %s127
          %s129 = smul.u32 3, %s15
          %131 = vsyncadd %s125, 0
          %s132 = smul.addr %s129, 8
          %s133 = scalar_lea.hbm %s0, %s132
          %s134 = sshll.u32 %s133, 4
          %s135 = int_to_ptr.hbm [resolvable:$true] %s134
          %s136 = sshll.u32 %s128, 4
          %s137 = int_to_ptr.vmem [resolvable:$true] %s136
          %142 = dma.hbm_to_vmem [thread:$0]  %s135, 768, %s137, %s125, 768, 384, 24
        $region24: #{tpu_custom_call.1} parent=19 // pred_fallthru
          _
      $region20: #{tpu_custom_call.1} parent=5 // pred_fallthru
        _
      %p143 = scmp.le.s32.totalorder 1, %s15
      %p144 = scmp.lt.s32.totalorder %s15, 3
      %p145 = pnand %p143, %p144
      %p146 = pneg %p145
      // Predicated region
      $region25: #{tpu_custom_call.1} parent=5 // pred_check
        _
      $region26: #{tpu_custom_call.1} parent=5 // pred_check_branch
        %148 = sbr.rel (%p145) target = $region28
      $region27: #{tpu_custom_call.1} parent=5 // pred_region
        %s149 = ssub.s32 %s15, 1
        %s150 = sand.u32 %s28, 1
        %s151 = scalar_lea.sflag [#allocation3], %s150
        %s152 = sand.u32 %s28, 1
        %s153 = smul.addr %s152, 48
        %s154 = scalar_lea.vmem [#allocation2], %s153
        // Predicated region
        $region29: #{tpu_custom_call.1} parent=27 // pred_check
          %p155 = pneg %p41
        $region30: #{tpu_custom_call.1} parent=27 // pred_check_branch
          %157 = sbr.rel (%p155) target = $region32
        $region31: #{tpu_custom_call.1} parent=27 // pred_region
          %159 = dma.done %s151, 768
        $region32: #{tpu_custom_call.1} parent=27 // pred_fallthru
          _
        // Predicated region
        $region33: #{tpu_custom_call.1} parent=27 // pred_check
          %p160 = pneg %p62
        $region34: #{tpu_custom_call.1} parent=27 // pred_check_branch
          %162 = sbr.rel (%p160) target = $region36
        $region35: #{tpu_custom_call.1} parent=27 // pred_region
          %164 = dma.done [#allocation6], 2048
        $region36: #{tpu_custom_call.1} parent=27 // pred_fallthru
          _
        %s165 = sand.u32 %s28, 1
        %s166 = scalar_lea.sflag [#allocation3], %s165
        %s167 = sand.u32 %s28, 1
        %s168 = smul.addr %s167, 48
        %s169 = scalar_lea.vmem [#allocation2], %s168
        %p170 = pneg %p41
        %p171 = pneg %p38
        %p172 = pneg %p62
        %p173 = pneg %p59
        %p174 = pneg %p88
        %p175 = pneg %p85
        %s176 = sand.u32 %s75, 1
        %s177 = scalar_lea.sflag [#allocation4], %s176
        %s178 = sand.u32 %s75, 1
        %s179 = smul.addr %s178, 3
        %s180 = scalar_lea.vmem [#allocation7], %s179
        %s181 = smul.u32 3, %s20
        %s182 = smul.u32 3, %s20
        %v183 = vld [vmem:[%s154] sm:$0xff]
        %v184 = vld [vmem:[%s154 + $0x8] sm:$0xff]
        %v185 = vld [vmem:[%s154 + $0x10] sm:$0xff]
        %v186 = vld [vmem:[%s154 + $0x18] sm:$0xff]
        %v187 = vld [vmem:[%s154 + $0x20] sm:$0xff]
        %v188 = vld [vmem:[%s154 + $0x28] sm:$0xff]
        %v189 = vmul.f32 %v183, %v183
        %v190 = vmul.f32 %v184, %v184
        %v191 = vmul.f32 %v185, %v185
        %v192 = vmul.f32 %v186, %v186
        %v193 = vmul.f32 %v187, %v187
        %v194 = vmul.f32 %v188, %v188
        %v195 = vadd.f32 %v189, %v192
        %v196 = vadd.f32 %v190, %v193
        %v197 = vadd.f32 %v191, %v194
        %v198 = vmax.f32 %v195, 1e-30
        %v199 = vmax.f32 %v196, 1e-30
        %v200 = vmax.f32 %v197, 1e-30
        %v201 = vrsqrt.pop %v198
        %v202 = vmul.f32 %v201, %v198
        %v203 = vmul.f32 %v202, %v201
        %v204 = vmul.f32 0.5, %v203
        %v205 = vsub.f32 1.5, %v204
        %v206 = vmul.f32 %v201, %v205
        %vm207 = vweird.f32 %v198
        %vm208 = vweird.f32 %v201
        %vm209 = vmor %vm207, %vm208
        %v210 = vsel %vm209, %v201, %v206
        %v211 = vrsqrt.pop %v199
        %v212 = vmul.f32 %v211, %v199
        %v213 = vmul.f32 %v212, %v211
        %v214 = vmul.f32 0.5, %v213
        %v215 = vsub.f32 1.5, %v214
        %v216 = vmul.f32 %v211, %v215
        %vm217 = vweird.f32 %v199
        %vm218 = vweird.f32 %v211
        %vm219 = vmor %vm217, %vm218
        %v220 = vsel %vm219, %v211, %v216
        %v221 = vrsqrt.pop %v200
        %v222 = vmul.f32 %v221, %v200
        %v223 = vmul.f32 %v222, %v221
        %v224 = vmul.f32 0.5, %v223
        %v225 = vsub.f32 1.5, %v224
        %v226 = vmul.f32 %v221, %v225
        %vm227 = vweird.f32 %v200
        %vm228 = vweird.f32 %v221
        %vm229 = vmor %vm227, %vm228
        %v230 = vsel %vm229, %v221, %v226
        %v231 = vmul.f32 %v183, %v210
        %v232 = vmul.f32 %v184, %v220
        %v233 = vmul.f32 %v185, %v230
        %v234 = vmul.f32 %v186, %v210
        %v235 = vmul.f32 %v187, %v220
        %v236 = vmul.f32 %v188, %v230
        %v237 = vlaneseq
        %v238 = vshrl.u32 %v237, 7
        %v239 = vand.u32 %v238, 1
        %vm240 = vcmp.gt.s32.totalorder %v239, 0
        %v241 = vsel %vm240, 1, 0
        %vm242 = vcmp.eq.s32.totalorder %v241, 1
        %v243 = vperm.slane %v234, 7
        %v244 = vperm.slane %v235, 7
        %v245 = vperm.slane %v236, 7
        %v246 = vperm.slane %v231, 7
        %v247 = vperm.slane %v232, 7
        %v248 = vperm.slane %v233, 7
        %v249 = vsel %vm242, %v243, %v246
        %v250 = vsel %vm242, %v244, %v247
        %v251 = vsel %vm242, %v245, %v248
        %v252 = vshra.s32 %v238, 1
        %v253 = vand.u32 %v252, 1
        %vm254 = vcmp.gt.s32.totalorder %v253, 0
        %v255 = vsel %vm254, 1, 0
        %vm256 = vcmp.eq.s32.totalorder %v255, 1
        %v257 = vperm.slane %v234, 6
        %v258 = vperm.slane %v235, 6
        %v259 = vperm.slane %v236, 6
        %v260 = vperm.slane %v231, 6
        %v261 = vperm.slane %v232, 6
        %v262 = vperm.slane %v233, 6
        %v263 = vsel %vm256, %v257, %v260
        %v264 = vsel %vm256, %v258, %v261
        %v265 = vsel %vm256, %v259, %v262
        %v266 = vshra.s32 %v238, 2
        %v267 = vand.u32 %v266, 1
        %vm268 = vcmp.gt.s32.totalorder %v267, 0
        %v269 = vsel %vm268, 1, 0
        %vm270 = vcmp.eq.s32.totalorder %v269, 1
        %v271 = vperm.slane %v234, 5
        %v272 = vperm.slane %v235, 5
        %v273 = vperm.slane %v236, 5
        %v274 = vperm.slane %v231, 5
        %v275 = vperm.slane %v232, 5
        %v276 = vperm.slane %v233, 5
        %v277 = vsel %vm270, %v271, %v274
        %v278 = vsel %vm270, %v272, %v275
        %v279 = vsel %vm270, %v273, %v276
        %v280 = vmul.f32 %v249, %v263
        %v281 = vmul.f32 %v250, %v264
        %v282 = vmul.f32 %v251, %v265
        %v283 = vmul.f32 %v280, %v277
        %v284 = vmul.f32 %v281, %v278
        %v285 = vmul.f32 %v282, %v279
        %v286 = vperm.slane %v231, 4
        %v287 = vperm.slane %v232, 4
        %v288 = vperm.slane %v233, 4
        %v289 = vmul.f32 %v283, %v286
        %v290 = vmul.f32 %v284, %v287
        %v291 = vmul.f32 %v285, %v288
        %v292 = vperm.slane %v234, 4
        %v293 = vperm.slane %v235, 4
        %v294 = vperm.slane %v236, 4
        %v295 = vmul.f32 %v283, %v292
        %v296 = vmul.f32 %v284, %v293
        %v297 = vmul.f32 %v285, %v294
        %v298 = vperm.slane %v231, 3
        %v299 = vperm.slane %v232, 3
        %v300 = vperm.slane %v233, 3
        %v301 = vmul.f32 %v289, %v298
        %v302 = vmul.f32 %v290, %v299
        %v303 = vmul.f32 %v291, %v300
        %v304 = vmul.f32 %v295, %v298
        %v305 = vmul.f32 %v296, %v299
        %v306 = vmul.f32 %v297, %v300
        %v307 = vperm.slane %v234, 3
        %v308 = vperm.slane %v235, 3
        %v309 = vperm.slane %v236, 3
        %v310 = vmul.f32 %v289, %v307
        %v311 = vmul.f32 %v290, %v308
        %v312 = vmul.f32 %v291, %v309
        %v313 = vmul.f32 %v295, %v307
        %v314 = vmul.f32 %v296, %v308
        %v315 = vmul.f32 %v297, %v309
        %v316 = vperm.slane %v231, 2
        %v317 = vperm.slane %v232, 2
        %v318 = vperm.slane %v233, 2
        %v319 = vmul.f32 %v301, %v316
        %v320 = vmul.f32 %v302, %v317
        %v321 = vmul.f32 %v303, %v318
        %v322 = vmul.f32 %v304, %v316
        %v323 = vmul.f32 %v305, %v317
        %v324 = vmul.f32 %v306, %v318
        %v325 = vmul.f32 %v310, %v316
        %v326 = vmul.f32 %v311, %v317
        %v327 = vmul.f32 %v312, %v318
        %v328 = vmul.f32 %v313, %v316
        %v329 = vmul.f32 %v314, %v317
        %v330 = vmul.f32 %v315, %v318
        %v331 = vperm.slane %v234, 2
        %v332 = vperm.slane %v235, 2
        %v333 = vperm.slane %v236, 2
        %v334 = vmul.f32 %v301, %v331
        %v335 = vmul.f32 %v302, %v332
        %v336 = vmul.f32 %v303, %v333
        %v337 = vmul.f32 %v304, %v331
        %v338 = vmul.f32 %v305, %v332
        %v339 = vmul.f32 %v306, %v333
        %v340 = vmul.f32 %v310, %v331
        %v341 = vmul.f32 %v311, %v332
        %v342 = vmul.f32 %v312, %v333
        %v343 = vmul.f32 %v313, %v331
        %v344 = vmul.f32 %v314, %v332
        %v345 = vmul.f32 %v315, %v333
        %v346 = vperm.slane %v231, 1
        %v347 = vperm.slane %v232, 1
        %v348 = vperm.slane %v233, 1
        %v349 = vmul.f32 %v319, %v346
        %v350 = vmul.f32 %v320, %v347
        %v351 = vmul.f32 %v321, %v348
        %v352 = vmul.f32 %v322, %v346
        %v353 = vmul.f32 %v323, %v347
        %v354 = vmul.f32 %v324, %v348
        %v355 = vmul.f32 %v325, %v346
        %v356 = vmul.f32 %v326, %v347
        %v357 = vmul.f32 %v327, %v348
        %v358 = vmul.f32 %v328, %v346
        %v359 = vmul.f32 %v329, %v347
        %v360 = vmul.f32 %v330, %v348
        %v361 = vmul.f32 %v334, %v346
        %v362 = vmul.f32 %v335, %v347
        %v363 = vmul.f32 %v336, %v348
        %v364 = vmul.f32 %v337, %v346
        %v365 = vmul.f32 %v338, %v347
        %v366 = vmul.f32 %v339, %v348
        %v367 = vmul.f32 %v340, %v346
        %v368 = vmul.f32 %v341, %v347
        %v369 = vmul.f32 %v342, %v348
        %v370 = vmul.f32 %v343, %v346
        %v371 = vmul.f32 %v344, %v347
        %v372 = vmul.f32 %v345, %v348
        %v373 = vperm.slane %v234, 1
        %v374 = vperm.slane %v235, 1
        %v375 = vperm.slane %v236, 1
        %v376 = vmul.f32 %v319, %v373
        %v377 = vmul.f32 %v320, %v374
        %v378 = vmul.f32 %v321, %v375
        %v379 = vmul.f32 %v322, %v373
        %v380 = vmul.f32 %v323, %v374
        %v381 = vmul.f32 %v324, %v375
        %v382 = vmul.f32 %v325, %v373
        %v383 = vmul.f32 %v326, %v374
        %v384 = vmul.f32 %v327, %v375
        %v385 = vmul.f32 %v328, %v373
        %v386 = vmul.f32 %v329, %v374
        %v387 = vmul.f32 %v330, %v375
        %v388 = vmul.f32 %v334, %v373
        %v389 = vmul.f32 %v335, %v374
        %v390 = vmul.f32 %v336, %v375
        %v391 = vmul.f32 %v337, %v373
        %v392 = vmul.f32 %v338, %v374
        %v393 = vmul.f32 %v339, %v375
        %v394 = vmul.f32 %v340, %v373
        %v395 = vmul.f32 %v341, %v374
        %v396 = vmul.f32 %v342, %v375
        %v397 = vmul.f32 %v343, %v373
        %v398 = vmul.f32 %v344, %v374
        %v399 = vmul.f32 %v345, %v375
        %v400 = vperm.slane %v231, 0
        %v401 = vperm.slane %v232, 0
        %v402 = vperm.slane %v233, 0
        %v403 = vmul.f32 %v349, %v400
        %v404 = vmul.f32 %v350, %v401
        %v405 = vmul.f32 %v351, %v402
        %v406 = vmul.f32 %v352, %v400
        %v407 = vmul.f32 %v353, %v401
        %v408 = vmul.f32 %v354, %v402
        %v409 = vmul.f32 %v355, %v400
        %v410 = vmul.f32 %v356, %v401
        %v411 = vmul.f32 %v357, %v402
        %v412 = vmul.f32 %v358, %v400
        %v413 = vmul.f32 %v359, %v401
        %v414 = vmul.f32 %v360, %v402
        %v415 = vmul.f32 %v361, %v400
        %v416 = vmul.f32 %v362, %v401
        %v417 = vmul.f32 %v363, %v402
        %v418 = vmul.f32 %v364, %v400
        %v419 = vmul.f32 %v365, %v401
        %v420 = vmul.f32 %v366, %v402
        %v421 = vmul.f32 %v367, %v400
        %v422 = vmul.f32 %v368, %v401
        %v423 = vmul.f32 %v369, %v402
        %v424 = vmul.f32 %v370, %v400
        %v425 = vmul.f32 %v371, %v401
        %v426 = vmul.f32 %v372, %v402
        %v427 = vmul.f32 %v376, %v400
        %v428 = vmul.f32 %v377, %v401
        %v429 = vmul.f32 %v378, %v402
        %v430 = vmul.f32 %v379, %v400
        %v431 = vmul.f32 %v380, %v401
        %v432 = vmul.f32 %v381, %v402
        %v433 = vmul.f32 %v382, %v400
        %v434 = vmul.f32 %v383, %v401
        %v435 = vmul.f32 %v384, %v402
        %v436 = vmul.f32 %v385, %v400
        %v437 = vmul.f32 %v386, %v401
        %v438 = vmul.f32 %v387, %v402
        %v439 = vmul.f32 %v388, %v400
        %v440 = vmul.f32 %v389, %v401
        %v441 = vmul.f32 %v390, %v402
        %v442 = vmul.f32 %v391, %v400
        %v443 = vmul.f32 %v392, %v401
        %v444 = vmul.f32 %v393, %v402
        %v445 = vmul.f32 %v394, %v400
        %v446 = vmul.f32 %v395, %v401
        %v447 = vmul.f32 %v396, %v402
        %v448 = vmul.f32 %v397, %v400
        %v449 = vmul.f32 %v398, %v401
        %v450 = vmul.f32 %v399, %v402
        %v451 = vperm.slane %v234, 0
        %v452 = vperm.slane %v235, 0
        %v453 = vperm.slane %v236, 0
        %v454 = vmul.f32 %v349, %v451
        %v455 = vmul.f32 %v350, %v452
        %v456 = vmul.f32 %v351, %v453
        %v457 = vmul.f32 %v352, %v451
        %v458 = vmul.f32 %v353, %v452
        %v459 = vmul.f32 %v354, %v453
        %v460 = vmul.f32 %v355, %v451
        %v461 = vmul.f32 %v356, %v452
        %v462 = vmul.f32 %v357, %v453
        %v463 = vmul.f32 %v358, %v451
        %v464 = vmul.f32 %v359, %v452
        %v465 = vmul.f32 %v360, %v453
        %v466 = vmul.f32 %v361, %v451
        %v467 = vmul.f32 %v362, %v452
        %v468 = vmul.f32 %v363, %v453
        %v469 = vmul.f32 %v364, %v451
        %v470 = vmul.f32 %v365, %v452
        %v471 = vmul.f32 %v366, %v453
        %v472 = vmul.f32 %v367, %v451
        %v473 = vmul.f32 %v368, %v452
        %v474 = vmul.f32 %v369, %v453
        %v475 = vmul.f32 %v370, %v451
        %v476 = vmul.f32 %v371, %v452
        %v477 = vmul.f32 %v372, %v453
        %v478 = vmul.f32 %v376, %v451
        %v479 = vmul.f32 %v377, %v452
        %v480 = vmul.f32 %v378, %v453
        %v481 = vmul.f32 %v379, %v451
        %v482 = vmul.f32 %v380, %v452
        %v483 = vmul.f32 %v381, %v453
        %v484 = vmul.f32 %v382, %v451
        %v485 = vmul.f32 %v383, %v452
        %v486 = vmul.f32 %v384, %v453
        %v487 = vmul.f32 %v385, %v451
        %v488 = vmul.f32 %v386, %v452
        %v489 = vmul.f32 %v387, %v453
        %v490 = vmul.f32 %v388, %v451
        %v491 = vmul.f32 %v389, %v452
        %v492 = vmul.f32 %v390, %v453
        %v493 = vmul.f32 %v391, %v451
        %v494 = vmul.f32 %v392, %v452
        %v495 = vmul.f32 %v393, %v453
        %v496 = vmul.f32 %v394, %v451
        %v497 = vmul.f32 %v395, %v452
        %v498 = vmul.f32 %v396, %v453
        %v499 = vmul.f32 %v397, %v451
        %v500 = vmul.f32 %v398, %v452
        %v501 = vmul.f32 %v399, %v453
        %v502 = vld [vmem:[#allocation5] sm:$0xff]
        %v503 = vld [vmem:[#allocation5 + $0x8] sm:$0xff]
        %v504 = vld [vmem:[#allocation5 + $0x10] sm:$0xff]
        %v505 = vld [vmem:[#allocation5 + $0x18] sm:$0xff]
        %v506 = vld [vmem:[#allocation5 + $0x20] sm:$0xff]
        %v507 = vld [vmem:[#allocation5 + $0x28] sm:$0xff]
        %v508 = vld [vmem:[#allocation5 + $0x30] sm:$0xff]
        %v509 = vld [vmem:[#allocation5 + $0x38] sm:$0xff]
        %v510 = vld [vmem:[#allocation5 + $0x40] sm:$0xff]
        %v511 = vld [vmem:[#allocation5 + $0x48] sm:$0xff]
        %v512 = vld [vmem:[#allocation5 + $0x50] sm:$0xff]
        %v513 = vld [vmem:[#allocation5 + $0x58] sm:$0xff]
        %v514 = vld [vmem:[#allocation5 + $0x60] sm:$0xff]
        %v515 = vld [vmem:[#allocation5 + $0x68] sm:$0xff]
        %v516 = vld [vmem:[#allocation5 + $0x70] sm:$0xff]
        %v517 = vld [vmem:[#allocation5 + $0x78] sm:$0xff]
        %v518 = vpack.c.bf16 %v406, %v403
        %v519 = vpack.c.bf16 %v407, %v404
        %v520 = vpack.c.bf16 %v408, %v405
        %v521 = vpack.c.bf16 %v412, %v409
        %v522 = vpack.c.bf16 %v413, %v410
        %v523 = vpack.c.bf16 %v414, %v411
        %v524 = vpack.c.bf16 %v418, %v415
        %v525 = vpack.c.bf16 %v419, %v416
        %v526 = vpack.c.bf16 %v420, %v417
        %v527 = vpack.c.bf16 %v424, %v421
        %v528 = vpack.c.bf16 %v425, %v422
        %v529 = vpack.c.bf16 %v426, %v423
        %v530 = vpack.c.bf16 %v430, %v427
        %v531 = vpack.c.bf16 %v431, %v428
        %v532 = vpack.c.bf16 %v432, %v429
        %v533 = vpack.c.bf16 %v436, %v433
        %v534 = vpack.c.bf16 %v437, %v434
        %v535 = vpack.c.bf16 %v438, %v435
        %v536 = vpack.c.bf16 %v442, %v439
        %v537 = vpack.c.bf16 %v443, %v440
        %v538 = vpack.c.bf16 %v444, %v441
        %v539 = vpack.c.bf16 %v448, %v445
        %v540 = vpack.c.bf16 %v449, %v446
        %v541 = vpack.c.bf16 %v450, %v447
        %v542 = vpack.c.bf16 %v457, %v454
        %v543 = vpack.c.bf16 %v458, %v455
        %v544 = vpack.c.bf16 %v459, %v456
        %v545 = vpack.c.bf16 %v463, %v460
        %v546 = vpack.c.bf16 %v464, %v461
        %v547 = vpack.c.bf16 %v465, %v462
        %v548 = vpack.c.bf16 %v469, %v466
        %v549 = vpack.c.bf16 %v470, %v467
        %v550 = vpack.c.bf16 %v471, %v468
        %v551 = vpack.c.bf16 %v475, %v472
        %v552 = vpack.c.bf16 %v476, %v473
        %v553 = vpack.c.bf16 %v477, %v474
        %v554 = vpack.c.bf16 %v481, %v478
        %v555 = vpack.c.bf16 %v482, %v479
        %v556 = vpack.c.bf16 %v483, %v480
        %v557 = vpack.c.bf16 %v487, %v484
        %v558 = vpack.c.bf16 %v488, %v485
        %v559 = vpack.c.bf16 %v489, %v486
        %v560 = vpack.c.bf16 %v493, %v490
        %v561 = vpack.c.bf16 %v494, %v491
        %v562 = vpack.c.bf16 %v495, %v492
        %v563 = vpack.c.bf16 %v499, %v496
        %v564 = vpack.c.bf16 %v500, %v497
        %v565 = vpack.c.bf16 %v501, %v498
        %v582 = vunpack.c.l.b16 %v502
        %v583 = vunpack.c.h.b16 %v502
        %v584 = vunpack.c.l.b16 %v503
        %v585 = vunpack.c.h.b16 %v503
        %v586 = vunpack.c.l.b16 %v504
        %v587 = vunpack.c.h.b16 %v504
        %v588 = vunpack.c.l.b16 %v505
        %v589 = vunpack.c.h.b16 %v505
        %v590 = vunpack.c.l.b16 %v506
        %v591 = vunpack.c.h.b16 %v506
        %v592 = vunpack.c.l.b16 %v507
        %v593 = vunpack.c.h.b16 %v507
        %v594 = vunpack.c.l.b16 %v508
        %v595 = vunpack.c.h.b16 %v508
        %v596 = vunpack.c.l.b16 %v509
        %v597 = vunpack.c.h.b16 %v509
        %v598 = vunpack.c.l.b16 %v510
        %v599 = vunpack.c.h.b16 %v510
        %v600 = vunpack.c.l.b16 %v511
        %v601 = vunpack.c.h.b16 %v511
        %v602 = vunpack.c.l.b16 %v512
        %v603 = vunpack.c.h.b16 %v512
        %v604 = vunpack.c.l.b16 %v513
        %v605 = vunpack.c.h.b16 %v513
        %v606 = vunpack.c.l.b16 %v514
        %v607 = vunpack.c.h.b16 %v514
        %v608 = vunpack.c.l.b16 %v515
        %v609 = vunpack.c.h.b16 %v515
        %v610 = vunpack.c.l.b16 %v516
        %v611 = vunpack.c.h.b16 %v516
        %v612 = vunpack.c.l.b16 %v517
        %v613 = vunpack.c.h.b16 %v517
        %v614 = vpack.c.b16 %v584, %v582
        %v615 = vpack.c.b16 %v585, %v583
        %v616 = vpack.c.b16 %v588, %v586
        %v617 = vpack.c.b16 %v589, %v587
        %v618 = vpack.c.b16 %v592, %v590
        %v619 = vpack.c.b16 %v593, %v591
        %v620 = vpack.c.b16 %v596, %v594
        %v621 = vpack.c.b16 %v597, %v595
        %v622 = vpack.c.b16 %v600, %v598
        %v623 = vpack.c.b16 %v601, %v599
        %v624 = vpack.c.b16 %v604, %v602
        %v625 = vpack.c.b16 %v605, %v603
        %v626 = vpack.c.b16 %v608, %v606
        %v627 = vpack.c.b16 %v609, %v607
        %v628 = vpack.c.b16 %v612, %v610
        %v629 = vpack.c.b16 %v613, %v611
        %646 = vmatpush.bf16.msra.mxu0 %v539
        %647 = vmatpush.bf16.msra.mxu0 %v536
        %648 = vmatpush.bf16.msra.mxu0 %v533
        %649 = vmatpush.bf16.msra.mxu0 %v530
        %650 = vmatpush.bf16.msra.mxu0 %v527
        %651 = vmatpush.bf16.msra.mxu0 %v524
        %652 = vmatpush.bf16.msra.mxu0 %v521
        %653 = vmatpush.bf16.msra.mxu0 %v518
        %654 = vmatmul.bf16.gmra.mxu0 %v614
        %v655 = vpop.f32.mrf.mxu0
        %v656 = vadd.f32 0.0, %v655
        %v657 = vpop.f32.mrf.mxu0
        %v658 = vadd.f32 0.0, %v657
        %659 = vmatmul.bf16.gmra.mxu0 %v616
        %v660 = vpop.f32.mrf.mxu0
        %v661 = vadd.f32 0.0, %v660
        %v662 = vpop.f32.mrf.mxu0
        %v663 = vadd.f32 0.0, %v662
        %664 = vmatmul.bf16.gmra.mxu0 %v618
        %v665 = vpop.f32.mrf.mxu0
        %v666 = vadd.f32 0.0, %v665
        %v667 = vpop.f32.mrf.mxu0
        %v668 = vadd.f32 0.0, %v667
        %669 = vmatmul.bf16.gmra.mxu0 %v620
        %v670 = vpop.f32.mrf.mxu0
        %v671 = vadd.f32 0.0, %v670
        %v672 = vpop.f32.mrf.mxu0
        %v673 = vadd.f32 0.0, %v672
        %674 = vmatmul.bf16.gmra.mxu0 %v622
        %v675 = vpop.f32.mrf.mxu0
        %v676 = vadd.f32 0.0, %v675
        %v677 = vpop.f32.mrf.mxu0
        %v678 = vadd.f32 0.0, %v677
        %679 = vmatmul.bf16.gmra.mxu0 %v624
        %v680 = vpop.f32.mrf.mxu0
        %v681 = vadd.f32 0.0, %v680
        %v682 = vpop.f32.mrf.mxu0
        %v683 = vadd.f32 0.0, %v682
        %684 = vmatmul.bf16.gmra.mxu0 %v626
        %v685 = vpop.f32.mrf.mxu0
        %v686 = vadd.f32 0.0, %v685
        %v687 = vpop.f32.mrf.mxu0
        %v688 = vadd.f32 0.0, %v687
        %689 = vmatmul.bf16.gmra.mxu0 %v628
        %v690 = vpop.f32.mrf.mxu0
        %v691 = vadd.f32 0.0, %v690
        %v692 = vpop.f32.mrf.mxu0
        %v693 = vadd.f32 0.0, %v692
        %694 = vdwg.mxu0
        %695 = vmatpush.bf16.msra.mxu0 %v563
        %696 = vmatpush.bf16.msra.mxu0 %v560
        %697 = vmatpush.bf16.msra.mxu0 %v557
        %698 = vmatpush.bf16.msra.mxu0 %v554
        %699 = vmatpush.bf16.msra.mxu0 %v551
        %700 = vmatpush.bf16.msra.mxu0 %v548
        %701 = vmatpush.bf16.msra.mxu0 %v545
        %702 = vmatpush.bf16.msra.mxu0 %v542
        %703 = vmatmul.bf16.gmra.mxu0 %v615
        %v704 = vpop.f32.mrf.mxu0
        %v705 = vadd.f32 %v656, %v704
        %v706 = vpop.f32.mrf.mxu0
        %v707 = vadd.f32 %v658, %v706
        %708 = vmatmul.bf16.gmra.mxu0 %v617
        %v709 = vpop.f32.mrf.mxu0
        %v710 = vadd.f32 %v661, %v709
        %v711 = vpop.f32.mrf.mxu0
        %v712 = vadd.f32 %v663, %v711
        %713 = vmatmul.bf16.gmra.mxu0 %v619
        %v714 = vpop.f32.mrf.mxu0
        %v715 = vadd.f32 %v666, %v714
        %v716 = vpop.f32.mrf.mxu0
        %v717 = vadd.f32 %v668, %v716
        %718 = vmatmul.bf16.gmra.mxu0 %v621
        %v719 = vpop.f32.mrf.mxu0
        %v720 = vadd.f32 %v671, %v719
        %v721 = vpop.f32.mrf.mxu0
        %v722 = vadd.f32 %v673, %v721
        %723 = vmatmul.bf16.gmra.mxu0 %v623
        %v724 = vpop.f32.mrf.mxu0
        %v725 = vadd.f32 %v676, %v724
        %v726 = vpop.f32.mrf.mxu0
        %v727 = vadd.f32 %v678, %v726
        %728 = vmatmul.bf16.gmra.mxu0 %v625
        %v729 = vpop.f32.mrf.mxu0
        %v730 = vadd.f32 %v681, %v729
        %v731 = vpop.f32.mrf.mxu0
        %v732 = vadd.f32 %v683, %v731
        %733 = vmatmul.bf16.gmra.mxu0 %v627
        %v734 = vpop.f32.mrf.mxu0
        %v735 = vadd.f32 %v686, %v734
        %v736 = vpop.f32.mrf.mxu0
        %v737 = vadd.f32 %v688, %v736
        %738 = vmatmul.bf16.gmra.mxu0 %v629
        %v739 = vpop.f32.mrf.mxu0
        %v740 = vadd.f32 %v691, %v739
        %v741 = vpop.f32.mrf.mxu0
        %v742 = vadd.f32 %v693, %v741
        %743 = vdwg.mxu0
        %744 = vmatpush.bf16.msra.mxu0 %v540
        %745 = vmatpush.bf16.msra.mxu0 %v537
        %746 = vmatpush.bf16.msra.mxu0 %v534
        %747 = vmatpush.bf16.msra.mxu0 %v531
        %748 = vmatpush.bf16.msra.mxu0 %v528
        %749 = vmatpush.bf16.msra.mxu0 %v525
        %750 = vmatpush.bf16.msra.mxu0 %v522
        %751 = vmatpush.bf16.msra.mxu0 %v519
        %752 = vmatmul.bf16.gmra.mxu0 %v614
        %v753 = vpop.f32.mrf.mxu0
        %v754 = vadd.f32 0.0, %v753
        %v755 = vpop.f32.mrf.mxu0
        %v756 = vadd.f32 0.0, %v755
        %757 = vmatmul.bf16.gmra.mxu0 %v616
        %v758 = vpop.f32.mrf.mxu0
        %v759 = vadd.f32 0.0, %v758
        %v760 = vpop.f32.mrf.mxu0
        %v761 = vadd.f32 0.0, %v760
        %762 = vmatmul.bf16.gmra.mxu0 %v618
        %v763 = vpop.f32.mrf.mxu0
        %v764 = vadd.f32 0.0, %v763
        %v765 = vpop.f32.mrf.mxu0
        %v766 = vadd.f32 0.0, %v765
        %767 = vmatmul.bf16.gmra.mxu0 %v620
        %v768 = vpop.f32.mrf.mxu0
        %v769 = vadd.f32 0.0, %v768
        %v770 = vpop.f32.mrf.mxu0
        %v771 = vadd.f32 0.0, %v770
        %772 = vmatmul.bf16.gmra.mxu0 %v622
        %v773 = vpop.f32.mrf.mxu0
        %v774 = vadd.f32 0.0, %v773
        %v775 = vpop.f32.mrf.mxu0
        %v776 = vadd.f32 0.0, %v775
        %777 = vmatmul.bf16.gmra.mxu0 %v624
        %v778 = vpop.f32.mrf.mxu0
        %v779 = vadd.f32 0.0, %v778
        %v780 = vpop.f32.mrf.mxu0
        %v781 = vadd.f32 0.0, %v780
        %782 = vmatmul.bf16.gmra.mxu0 %v626
        %v783 = vpop.f32.mrf.mxu0
        %v784 = vadd.f32 0.0, %v783
        %v785 = vpop.f32.mrf.mxu0
        %v786 = vadd.f32 0.0, %v785
        %787 = vmatmul.bf16.gmra.mxu0 %v628
        %v788 = vpop.f32.mrf.mxu0
        %v789 = vadd.f32 0.0, %v788
        %v790 = vpop.f32.mrf.mxu0
        %v791 = vadd.f32 0.0, %v790
        %792 = vdwg.mxu0
        %793 = vmatpush.bf16.msra.mxu0 %v564
        %794 = vmatpush.bf16.msra.mxu0 %v561
        %795 = vmatpush.bf16.msra.mxu0 %v558
        %796 = vmatpush.bf16.msra.mxu0 %v555
        %797 = vmatpush.bf16.msra.mxu0 %v552
        %798 = vmatpush.bf16.msra.mxu0 %v549
        %799 = vmatpush.bf16.msra.mxu0 %v546
        %800 = vmatpush.bf16.msra.mxu0 %v543
        %801 = vmatmul.bf16.gmra.mxu0 %v615
        %v802 = vpop.f32.mrf.mxu0
        %v803 = vadd.f32 %v754, %v802
        %v804 = vpop.f32.mrf.mxu0
        %v805 = vadd.f32 %v756, %v804
        %806 = vmatmul.bf16.gmra.mxu0 %v617
        %v807 = vpop.f32.mrf.mxu0
        %v808 = vadd.f32 %v759, %v807
        %v809 = vpop.f32.mrf.mxu0
        %v810 = vadd.f32 %v761, %v809
        %811 = vmatmul.bf16.gmra.mxu0 %v619
        %v812 = vpop.f32.mrf.mxu0
        %v813 = vadd.f32 %v764, %v812
        %v814 = vpop.f32.mrf.mxu0
        %v815 = vadd.f32 %v766, %v814
        %816 = vmatmul.bf16.gmra.mxu0 %v621
        %v817 = vpop.f32.mrf.mxu0
        %v818 = vadd.f32 %v769, %v817
        %v819 = vpop.f32.mrf.mxu0
        %v820 = vadd.f32 %v771, %v819
        %821 = vmatmul.bf16.gmra.mxu0 %v623
        %v822 = vpop.f32.mrf.mxu0
        %v823 = vadd.f32 %v774, %v822
        %v824 = vpop.f32.mrf.mxu0
        %v825 = vadd.f32 %v776, %v824
        %826 = vmatmul.bf16.gmra.mxu0 %v625
        %v827 = vpop.f32.mrf.mxu0
        %v828 = vadd.f32 %v779, %v827
        %v829 = vpop.f32.mrf.mxu0
        %v830 = vadd.f32 %v781, %v829
        %831 = vmatmul.bf16.gmra.mxu0 %v627
        %v832 = vpop.f32.mrf.mxu0
        %v833 = vadd.f32 %v784, %v832
        %v834 = vpop.f32.mrf.mxu0
        %v835 = vadd.f32 %v786, %v834
        %836 = vmatmul.bf16.gmra.mxu0 %v629
        %v837 = vpop.f32.mrf.mxu0
        %v838 = vadd.f32 %v789, %v837
        %v839 = vpop.f32.mrf.mxu0
        %v840 = vadd.f32 %v791, %v839
        %841 = vdwg.mxu0
        %842 = vmatpush.bf16.msra.mxu0 %v541
        %843 = vmatpush.bf16.msra.mxu0 %v538
        %844 = vmatpush.bf16.msra.mxu0 %v535
        %845 = vmatpush.bf16.msra.mxu0 %v532
        %846 = vmatpush.bf16.msra.mxu0 %v529
        %847 = vmatpush.bf16.msra.mxu0 %v526
        %848 = vmatpush.bf16.msra.mxu0 %v523
        %849 = vmatpush.bf16.msra.mxu0 %v520
        %850 = vmatmul.bf16.gmra.mxu0 %v614
        %v851 = vpop.f32.mrf.mxu0
        %v852 = vadd.f32 0.0, %v851
        %v853 = vpop.f32.mrf.mxu0
        %v854 = vadd.f32 0.0, %v853
        %855 = vmatmul.bf16.gmra.mxu0 %v616
        %v856 = vpop.f32.mrf.mxu0
        %v857 = vadd.f32 0.0, %v856
        %v858 = vpop.f32.mrf.mxu0
        %v859 = vadd.f32 0.0, %v858
        %860 = vmatmul.bf16.gmra.mxu0 %v618
        %v861 = vpop.f32.mrf.mxu0
        %v862 = vadd.f32 0.0, %v861
        %v863 = vpop.f32.mrf.mxu0
        %v864 = vadd.f32 0.0, %v863
        %865 = vmatmul.bf16.gmra.mxu0 %v620
        %v866 = vpop.f32.mrf.mxu0
        %v867 = vadd.f32 0.0, %v866
        %v868 = vpop.f32.mrf.mxu0
        %v869 = vadd.f32 0.0, %v868
        %870 = vmatmul.bf16.gmra.mxu0 %v622
        %v871 = vpop.f32.mrf.mxu0
        %v872 = vadd.f32 0.0, %v871
        %v873 = vpop.f32.mrf.mxu0
        %v874 = vadd.f32 0.0, %v873
        %875 = vmatmul.bf16.gmra.mxu0 %v624
        %v876 = vpop.f32.mrf.mxu0
        %v877 = vadd.f32 0.0, %v876
        %v878 = vpop.f32.mrf.mxu0
        %v879 = vadd.f32 0.0, %v878
        %880 = vmatmul.bf16.gmra.mxu0 %v626
        %v881 = vpop.f32.mrf.mxu0
        %v882 = vadd.f32 0.0, %v881
        %v883 = vpop.f32.mrf.mxu0
        %v884 = vadd.f32 0.0, %v883
        %885 = vmatmul.bf16.gmra.mxu0 %v628
        %v886 = vpop.f32.mrf.mxu0
        %v887 = vadd.f32 0.0, %v886
        %v888 = vpop.f32.mrf.mxu0
        %v889 = vadd.f32 0.0, %v888
        %890 = vdwg.mxu0
        %891 = vmatpush.bf16.msra.mxu0 %v565
        %892 = vmatpush.bf16.msra.mxu0 %v562
        %893 = vmatpush.bf16.msra.mxu0 %v559
        %894 = vmatpush.bf16.msra.mxu0 %v556
        %895 = vmatpush.bf16.msra.mxu0 %v553
        %896 = vmatpush.bf16.msra.mxu0 %v550
        %897 = vmatpush.bf16.msra.mxu0 %v547
        %898 = vmatpush.bf16.msra.mxu0 %v544
        %899 = vmatmul.bf16.gmra.mxu0 %v615
        %v900 = vpop.f32.mrf.mxu0
        %v901 = vadd.f32 %v852, %v900
        %v902 = vpop.f32.mrf.mxu0
        %v903 = vadd.f32 %v854, %v902
        %904 = vmatmul.bf16.gmra.mxu0 %v617
        %v905 = vpop.f32.mrf.mxu0
        %v906 = vadd.f32 %v857, %v905
        %v907 = vpop.f32.mrf.mxu0
        %v908 = vadd.f32 %v859, %v907
        %909 = vmatmul.bf16.gmra.mxu0 %v619
        %v910 = vpop.f32.mrf.mxu0
        %v911 = vadd.f32 %v862, %v910
        %v912 = vpop.f32.mrf.mxu0
        %v913 = vadd.f32 %v864, %v912
        %914 = vmatmul.bf16.gmra.mxu0 %v621
        %v915 = vpop.f32.mrf.mxu0
        %v916 = vadd.f32 %v867, %v915
        %v917 = vpop.f32.mrf.mxu0
        %v918 = vadd.f32 %v869, %v917
        %919 = vmatmul.bf16.gmra.mxu0 %v623
        %v920 = vpop.f32.mrf.mxu0
        %v921 = vadd.f32 %v872, %v920
        %v922 = vpop.f32.mrf.mxu0
        %v923 = vadd.f32 %v874, %v922
        %924 = vmatmul.bf16.gmra.mxu0 %v625
        %v925 = vpop.f32.mrf.mxu0
        %v926 = vadd.f32 %v877, %v925
        %v927 = vpop.f32.mrf.mxu0
        %v928 = vadd.f32 %v879, %v927
        %929 = vmatmul.bf16.gmra.mxu0 %v627
        %v930 = vpop.f32.mrf.mxu0
        %v931 = vadd.f32 %v882, %v930
        %v932 = vpop.f32.mrf.mxu0
        %v933 = vadd.f32 %v884, %v932
        %934 = vmatmul.bf16.gmra.mxu0 %v629
        %v935 = vpop.f32.mrf.mxu0
        %v936 = vadd.f32 %v887, %v935
        %v937 = vpop.f32.mrf.mxu0
        %v938 = vadd.f32 %v889, %v937
        %939 = vdwg.mxu0
        %v940 = vmul.f32 %v705, %v705
        %v941 = vmul.f32 %v803, %v803
        %v942 = vmul.f32 %v901, %v901
        %v943 = vmul.f32 %v707, %v707
        %v944 = vmul.f32 %v805, %v805
        %v945 = vmul.f32 %v903, %v903
        %v946 = vmul.f32 %v710, %v710
        %v947 = vmul.f32 %v808, %v808
        %v948 = vmul.f32 %v906, %v906
        %v949 = vmul.f32 %v712, %v712
        %v950 = vmul.f32 %v810, %v810
        %v951 = vmul.f32 %v908, %v908
        %v952 = vmul.f32 %v715, %v715
        %v953 = vmul.f32 %v813, %v813
        %v954 = vmul.f32 %v911, %v911
        %v955 = vmul.f32 %v717, %v717
        %v956 = vmul.f32 %v815, %v815
        %v957 = vmul.f32 %v913, %v913
        %v958 = vmul.f32 %v720, %v720
        %v959 = vmul.f32 %v818, %v818
        %v960 = vmul.f32 %v916, %v916
        %v961 = vmul.f32 %v722, %v722
        %v962 = vmul.f32 %v820, %v820
        %v963 = vmul.f32 %v918, %v918
        %v964 = vmul.f32 %v725, %v725
        %v965 = vmul.f32 %v823, %v823
        %v966 = vmul.f32 %v921, %v921
        %v967 = vmul.f32 %v727, %v727
        %v968 = vmul.f32 %v825, %v825
        %v969 = vmul.f32 %v923, %v923
        %v970 = vmul.f32 %v730, %v730
        %v971 = vmul.f32 %v828, %v828
        %v972 = vmul.f32 %v926, %v926
        %v973 = vmul.f32 %v732, %v732
        %v974 = vmul.f32 %v830, %v830
        %v975 = vmul.f32 %v928, %v928
        %v976 = vmul.f32 %v735, %v735
        %v977 = vmul.f32 %v833, %v833
        %v978 = vmul.f32 %v931, %v931
        %v979 = vmul.f32 %v737, %v737
        %v980 = vmul.f32 %v835, %v835
        %v981 = vmul.f32 %v933, %v933
        %v982 = vmul.f32 %v740, %v740
        %v983 = vmul.f32 %v838, %v838
        %v984 = vmul.f32 %v936, %v936
        %v985 = vmul.f32 %v742, %v742
        %v986 = vmul.f32 %v840, %v840
        %v987 = vmul.f32 %v938, %v938
        %v988 = vadd.f32 %v940, %v943
        %v989 = vadd.f32 %v988, %v946
        %v990 = vadd.f32 %v989, %v949
        %v991 = vadd.f32 %v990, %v952
        %v992 = vadd.f32 %v991, %v955
        %v993 = vadd.f32 %v992, %v958
        %v994 = vadd.f32 %v993, %v961
        %v995 = vadd.f32 %v994, %v964
        %v996 = vadd.f32 %v995, %v967
        %v997 = vadd.f32 %v996, %v970
        %v998 = vadd.f32 %v997, %v973
        %v999 = vadd.f32 %v998, %v976
        %v1000 = vadd.f32 %v999, %v979
        %v1001 = vadd.f32 %v1000, %v982
        %v1002 = vadd.f32 %v1001, %v985
        %v1003 = vrot.slane %v1002, 4
        %v1004 = vadd.f32 %v1002, %v1003
        %v1005 = vrot.slane %v1004, 2
        %v1006 = vadd.f32 %v1004, %v1005
        %v1007 = vrot.slane %v1006, 1
        %v1008 = vadd.f32 %v1006, %v1007
        %v1009 = vadd.f32 %v941, %v944
        %v1010 = vadd.f32 %v1009, %v947
        %v1011 = vadd.f32 %v1010, %v950
        %v1012 = vadd.f32 %v1011, %v953
        %v1013 = vadd.f32 %v1012, %v956
        %v1014 = vadd.f32 %v1013, %v959
        %v1015 = vadd.f32 %v1014, %v962
        %v1016 = vadd.f32 %v1015, %v965
        %v1017 = vadd.f32 %v1016, %v968
        %v1018 = vadd.f32 %v1017, %v971
        %v1019 = vadd.f32 %v1018, %v974
        %v1020 = vadd.f32 %v1019, %v977
        %v1021 = vadd.f32 %v1020, %v980
        %v1022 = vadd.f32 %v1021, %v983
        %v1023 = vadd.f32 %v1022, %v986
        %v1024 = vrot.slane %v1023, 4
        %v1025 = vadd.f32 %v1023, %v1024
        %v1026 = vrot.slane %v1025, 2
        %v1027 = vadd.f32 %v1025, %v1026
        %v1028 = vrot.slane %v1027, 1
        %v1029 = vadd.f32 %v1027, %v1028
        %v1030 = vadd.f32 %v942, %v945
        %v1031 = vadd.f32 %v1030, %v948
        %v1032 = vadd.f32 %v1031, %v951
        %v1033 = vadd.f32 %v1032, %v954
        %v1034 = vadd.f32 %v1033, %v957
        %v1035 = vadd.f32 %v1034, %v960
        %v1036 = vadd.f32 %v1035, %v963
        %v1037 = vadd.f32 %v1036, %v966
        %v1038 = vadd.f32 %v1037, %v969
        %v1039 = vadd.f32 %v1038, %v972
        %v1040 = vadd.f32 %v1039, %v975
        %v1041 = vadd.f32 %v1040, %v978
        %v1042 = vadd.f32 %v1041, %v981
        %v1043 = vadd.f32 %v1042, %v984
        %v1044 = vadd.f32 %v1043, %v987
        %v1045 = vrot.slane %v1044, 4
        %v1046 = vadd.f32 %v1044, %v1045
        %v1047 = vrot.slane %v1046, 2
        %v1048 = vadd.f32 %v1046, %v1047
        %v1049 = vrot.slane %v1048, 1
        %v1050 = vadd.f32 %v1048, %v1049
        %v1054 = vrot.slane %v1029, 7
        %v1055 = vrot.slane %v1050, 6
        %vm1056 = vcmask 1040384
        %v1057 = vsel %vm1056, %v1008, %v1054
        %vm1058 = vcmask 1041408
        %v1059 = vsel %vm1058, %v1057, %v1055
        %v1061 = vlaneseq
        %vm1062 = vcmp.ge.s32.totalorder %v1061, 0
        %vm1063 = vcmp.lt.s32.totalorder %v1061, 384
        %vm1064 = vmand %vm1062, %vm1063
        %1065 = vst.msk [vmem:[%s180] sm:$0x7] %vm1064, %v1059
        %s1066 = sand.u32 %s75, 1
        %s1067 = scalar_lea.sflag [#allocation4], %s1066
        %s1068 = sand.u32 %s75, 1
        %s1069 = smul.addr %s1068, 3
        %s1070 = scalar_lea.vmem [#allocation7], %s1069
        // Predicated region
        $region37: #{tpu_custom_call.1} parent=27 // pred_check
          %p1071 = pneg %p85
        $region38: #{tpu_custom_call.1} parent=27 // pred_check_branch
          %1073 = sbr.rel (%p1071) target = $region40
        $region39: #{tpu_custom_call.1} parent=27 // pred_region
          %s1074 = smul.u32 3, %s20
          %1076 = vsyncadd %s1067, 0
          %s1077 = scalar_lea.hbm %s2, %s1074
          %s1079 = sshll.u32 %s1070, 4
          %s1080 = int_to_ptr.vmem [resolvable:$true] %s1079
          %s1081 = sshll.u32 %s1077, 4
          %s1082 = int_to_ptr.hbm [resolvable:$true] %s1081
          %1084 = dma.vmem_to_hbm [thread:$0]  %s1080, 48, %s1082, %s1067
        $region40: #{tpu_custom_call.1} parent=27 // pred_fallthru
          _
      $region28: #{tpu_custom_call.1} parent=5 // pred_fallthru
        _
      %p1085 = scmp.le.s32.totalorder 2, %s15
      // Predicated region
      $region41: #{tpu_custom_call.1} parent=5 // pred_check
        %p1086 = pneg %p1085
      $region42: #{tpu_custom_call.1} parent=5 // pred_check_branch
        %1088 = sbr.rel (%p1086) target = $region44
      $region43: #{tpu_custom_call.1} parent=5 // pred_region
        %s1089 = ssub.s32 %s15, 2
        // Predicated region
        $region45: #{tpu_custom_call.1} parent=43 // pred_check
          %p1090 = pneg %p91
        $region46: #{tpu_custom_call.1} parent=43 // pred_check_branch
          %1092 = sbr.rel (%p1090) target = $region48
        $region47: #{tpu_custom_call.1} parent=43 // pred_region
          %s1093 = sand.u32 %s76, 1
          %s1094 = scalar_lea.sflag [#allocation4], %s1093
          %s1095 = sand.u32 %s76, 1
          %s1096 = smul.addr %s1095, 3
          %s1097 = scalar_lea.vmem [#allocation7], %s1096
          %1099 = dma.done %s1094, 48
        $region48: #{tpu_custom_call.1} parent=43 // pred_fallthru
          _
      $region44: #{tpu_custom_call.1} parent=5 // pred_fallthru
        _
    $region6: #{tpu_custom_call.1} parent=1 // loop_footer
      %s19 = sadd.s32 1, %s15
    $region7: #{tpu_custom_call.1} parent=1 // loop_footer_branch
      %14 = sbr.rel target = $region3
    $region8: #{tpu_custom_call.1} parent=1 // loop_exit
      _
    %1100 = vsyncpa [#allocation3], 1
    %s1101 = scalar_lea.sflag [#allocation3], 1
    %1102 = vsyncpa %s1101, 1
    %1103 = vsyncpa [#allocation6], 1
    %1104 = vsyncpa [#allocation4], 1
    %s1105 = scalar_lea.sflag [#allocation4], 1
    %1106 = vsyncpa %s1105, 1

</llo_original>
